<compile_context>
chip_gen: v6e
topology: v6e:2x2x1
jax: 0.10.0
libtpu: 0.0.40
codegen_flags: <defaults>
</compile_context>

<pallas_src>
import jax
import jax.numpy as jnp
from jax.experimental import pallas as pl
from jax.experimental.pallas import tpu as pltpu


def _weighted_patch_kernel(x_ref, out_ref):
    # x_ref  : (4, R*P, Wp)      R patch-rows of one image, NCHW order, ch 3 = mask
    # out_ref: (R, nW, 3, P, P)  matching weighted patches
    R, nW, _, _, P = out_ref.shape
    inv_pp = jnp.float32(1.0 / (P * P))
    for r in range(R):
        for w in range(nW):
            # (4, P, P): the 3 image channels + the mask channel of one patch.
            tile = x_ref[:, pl.ds(r * P, P), pl.ds(w * P, P)].astype(jnp.float32)
            cov = jnp.sum(tile[3], axis=(0, 1), keepdims=True)            # (1, 1)
            out_ref[r, w] = (tile[:3] * (cov * inv_pp)).astype(out_ref.dtype)


def _rows_per_step(B, nH, nW, P, Wp, itemsize):
    """Largest divisor R of nH whose double-buffered block stays within a modest
    VMEM budget and keeps the static unroll bounded (keeps >=2 grid steps when
    the problem has them, so pipelining / megacore sharding still apply)."""
    budget = 12 * 1024 * 1024                     # in+out blocks, double-buffered
    best = 1
    for r in range(1, nH + 1):
        if nH % r:
            continue
        if 14 * r * P * Wp * itemsize > budget:   # 2 * (4 + 3) * R * P * Wp * itemsize
            continue
        if r * nW > 256:                          # bound unrolled statements / compile time
            continue
        if B * (nH // r) < min(2, B * nH):
            continue
        best = r
    return best


def weighted_patchify(x, patch_size=16):
    """x: (B, 4, H, W) float, NCHW; channel 3 is the mask.
    Returns (B, nH*nW, 3, P, P) mask-coverage-weighted patches."""
    B, C, H, W = x.shape
    assert C == 4, "Input must have 4 channels (image + mask)."
    P = patch_size
    pad_h = (-H) % P
    pad_w = (-W) % P
    if pad_h or pad_w:                            # same zero padding as F.pad
        x = jnp.pad(x, ((0, 0), (0, 0), (0, pad_h), (0, pad_w)))
    Hp, Wp = H + pad_h, W + pad_w
    nH, nW = Hp // P, Wp // P

    R = _rows_per_step(B, nH, nW, P, Wp, x.dtype.itemsize)

    out = pl.pallas_call(
        _weighted_patch_kernel,
        out_shape=jax.ShapeDtypeStruct((B, nH, nW, 3, P, P), x.dtype),
        grid_spec=pltpu.PrefetchScalarGridSpec(
            num_scalar_prefetch=0,
            grid=(B, nH // R),
            in_specs=[
                # All 4 channels of R patch-rows of one image: ref (4, R*P, Wp).
                # Minor block dims (R*P, Wp): R*P is a multiple of 8, Wp is the
                # full array width.
                pl.BlockSpec((None, 4, R * P, Wp), lambda b, h: (b, 0, h, 0)),
            ],
            # R patch-rows of one image's output: ref (R, nW, 3, P, P).  The
            # corresponding HBM region is fully contiguous.
            out_specs=pl.BlockSpec((None, R, nW, 3, P, P),
                                   lambda b, h: (b, h, 0, 0, 0, 0)),
        ),
        compiler_params=pltpu.CompilerParams(
            dimension_semantics=("parallel", "parallel"),
            vmem_limit_bytes=48 * 1024 * 1024,
        ),
    )(x)
    # (B, nH, nW, 3, P, P) -> (B, nH*nW, 3, P, P) is a free reshape.
    return out.reshape(B, nH * nW, 3, P, P)


def _reference(x, patch_size=16):
    """Pure-JAX reference of the intended forward semantics."""
    B, C, H, W = x.shape
    P = patch_size
    pad_h = (-H) % P
    pad_w = (-W) % P
    xp = jnp.pad(x, ((0, 0), (0, 0), (0, pad_h), (0, pad_w)))
    Hp, Wp = H + pad_h, W + pad_w
    nH, nW = Hp // P, Wp // P
    image = xp[:, :3]
    mask = xp[:, 3]
    patches = image.reshape(B, 3, nH, P, nW, P).transpose(0, 2, 4, 1, 3, 5)
    patches = patches.reshape(B, nH * nW, 3, P, P)
    mpatch = mask.reshape(B, nH, P, nW, P).transpose(0, 1, 3, 2, 4)
    mpatch = mpatch.reshape(B, nH * nW, P, P)
    weights = mpatch.sum(axis=(-2, -1)) / jnp.float32(P * P)
    return patches * weights[:, :, None, None, None]


if __name__ == "__main__":
    key = jax.random.PRNGKey(0)
    k_img, k_msk, k_img2, k_msk2 = jax.random.split(key, 4)
    P = 16

    # Case 1: ragged spatial size (exercises the zero-padding path, nH=nW=3).
    B, H, W = 2, 40, 40
    img = jax.random.normal(k_img, (B, 3, H, W), dtype=jnp.float32)
    msk = (jax.random.uniform(k_msk, (B, 1, H, W)) > 0.5).astype(jnp.float32)
    x = jnp.concatenate([img, msk], axis=1)            # (2, 4, 40, 40)

    out = jax.block_until_ready(weighted_patchify(x, patch_size=P))
    ref = _reference(x, patch_size=P)
    assert out.shape == (B, 9, 3, P, P), out.shape
    assert out.dtype == jnp.float32
    if not jnp.allclose(out, ref, atol=1e-5, rtol=1e-5):
        raise AssertionError("Pallas kernel output mismatch vs reference (case 1)")

    # Case 2: lane-aligned width (Wp = 128, nW = 8), no padding needed.
    B2, H2, W2 = 1, 32, 128
    img2 = jax.random.normal(k_img2, (B2, 3, H2, W2), dtype=jnp.float32)
    msk2 = (jax.random.uniform(k_msk2, (B2, 1, H2, W2)) > 0.5).astype(jnp.float32)
    x2 = jnp.concatenate([img2, msk2], axis=1)         # (1, 4, 32, 128)

    out2 = jax.block_until_ready(weighted_patchify(x2, patch_size=P))
    ref2 = _reference(x2, patch_size=P)
    assert out2.shape == (B2, 16, 3, P, P), out2.shape
    if not jnp.allclose(out2, ref2, atol=1e-5, rtol=1e-5):
        raise AssertionError("Pallas kernel output mismatch vs reference (case 2)")

    print("KERNEL_OK")
</pallas_src>

<mosaic_0001>
module attributes {stable_mosaic.version = 11 : i64} {
  func.func @_weighted_patch_kernel(%arg0: i32, %arg1: i32, %arg2: memref<1x4x48x48xf32, #tpu.memory_space<vmem>>, %arg3: memref<1x3x3x3x16x16xf32, #tpu.memory_space<vmem>>) attributes {dimension_semantics = [#tpu.dimension_semantics<parallel>, #tpu.dimension_semantics<parallel>], iteration_bounds = array<i64: 2, 1>, scalar_prefetch = 0 : i64, scratch_operands = 0 : i64, tpu.core_type = #tpu.core_type<tc>, window_params = [{transform_indices = @transform_0, window_bounds = array<i64: 1, 4, 48, 48>}, {transform_indices = @transform_1, window_bounds = array<i64: 1, 3, 3, 3, 16, 16>}]} {
    %c0 = arith.constant 0 : index
    %c0_0 = arith.constant 0 : index
    %c0_1 = arith.constant 0 : index
    %c0_2 = arith.constant 0 : index
    %0 = vector.load %arg2[%c0, %c0_0, %c0_1, %c0_2] : memref<1x4x48x48xf32, #tpu.memory_space<vmem>>, vector<1x4x16x16xf32>
    %1 = vector.shape_cast %0 : vector<1x4x16x16xf32> to vector<4x16x16xf32>
    %2 = vector.extract_strided_slice %1 {offsets = [3, 0, 0], sizes = [1, 16, 16], strides = [1, 1, 1]} : vector<4x16x16xf32> to vector<1x16x16xf32>
    %3 = vector.shape_cast %2 : vector<1x16x16xf32> to vector<16x16xf32>
    %4 = vector.shape_cast %3 : vector<16x16xf32> to vector<1x16x16xf32>
    %cst = arith.constant dense<0.000000e+00> : vector<1xf32>
    %5 = vector.multi_reduction <add>, %4, %cst [1, 2] : vector<1x16x16xf32> to vector<1xf32>
    %6 = vector.shape_cast %5 : vector<1xf32> to vector<1x1x1xf32>
    %7 = vector.extract %6[0, 0, 0] : f32 from vector<1x1x1xf32>
    %8 = vector.broadcast %7 : f32 to vector<1x1xf32>
    %9 = vector.extract_strided_slice %1 {offsets = [0, 0, 0], sizes = [3, 16, 16], strides = [1, 1, 1]} : vector<4x16x16xf32> to vector<3x16x16xf32>
    %cst_3 = arith.constant 3.906250e-03 : f32
    %10 = vector.broadcast %cst_3 : f32 to vector<1x1xf32>
    %11 = arith.mulf %8, %10 : vector<1x1xf32>
    %12 = vector.shape_cast %11 : vector<1x1xf32> to vector<1x1x1xf32>
    %13 = vector.broadcast %12 : vector<1x1x1xf32> to vector<3x16x16xf32>
    %14 = arith.mulf %9, %13 : vector<3x16x16xf32>
    %c0_4 = arith.constant 0 : index
    %c0_5 = arith.constant 0 : index
    %c0_6 = arith.constant 0 : index
    %c0_7 = arith.constant 0 : index
    %c0_8 = arith.constant 0 : index
    %c0_9 = arith.constant 0 : index
    %15 = vector.load %arg3[%c0_4, %c0_5, %c0_6, %c0_7, %c0_8, %c0_9] : memref<1x3x3x3x16x16xf32, #tpu.memory_space<vmem>>, vector<1x1x1x3x16x16xf32>
    %16 = vector.shape_cast %15 : vector<1x1x1x3x16x16xf32> to vector<3x16x16xf32>
    %17 = vector.shape_cast %14 : vector<3x16x16xf32> to vector<1x1x1x3x16x16xf32>
    tpu.vector_store %arg3[%c0_4, %c0_5, %c0_6, %c0_7, %c0_8, %c0_9], %17 {strides = array<i32>} : memref<1x3x3x3x16x16xf32, #tpu.memory_space<vmem>>, vector<1x1x1x3x16x16xf32>,
    %c0_10 = arith.constant 0 : index
    %c0_11 = arith.constant 0 : index
    %c0_12 = arith.constant 0 : index
    %c16 = arith.constant 16 : index
    %18 = vector.load %arg2[%c0_10, %c0_11, %c0_12, %c16] : memref<1x4x48x48xf32, #tpu.memory_space<vmem>>, vector<1x4x16x16xf32>
    %19 = vector.shape_cast %18 : vector<1x4x16x16xf32> to vector<4x16x16xf32>
    %20 = vector.extract_strided_slice %19 {offsets = [3, 0, 0], sizes = [1, 16, 16], strides = [1, 1, 1]} : vector<4x16x16xf32> to vector<1x16x16xf32>
    %21 = vector.shape_cast %20 : vector<1x16x16xf32> to vector<16x16xf32>
    %22 = vector.shape_cast %21 : vector<16x16xf32> to vector<1x16x16xf32>
    %cst_13 = arith.constant dense<0.000000e+00> : vector<1xf32>
    %23 = vector.multi_reduction <add>, %22, %cst_13 [1, 2] : vector<1x16x16xf32> to vector<1xf32>
    %24 = vector.shape_cast %23 : vector<1xf32> to vector<1x1x1xf32>
    %25 = vector.extract %24[0, 0, 0] : f32 from vector<1x1x1xf32>
    %26 = vector.broadcast %25 : f32 to vector<1x1xf32>
    %27 = vector.extract_strided_slice %19 {offsets = [0, 0, 0], sizes = [3, 16, 16], strides = [1, 1, 1]} : vector<4x16x16xf32> to vector<3x16x16xf32>
    %cst_14 = arith.constant 3.906250e-03 : f32
    %28 = vector.broadcast %cst_14 : f32 to vector<1x1xf32>
    %29 = arith.mulf %26, %28 : vector<1x1xf32>
    %30 = vector.shape_cast %29 : vector<1x1xf32> to vector<1x1x1xf32>
    %31 = vector.broadcast %30 : vector<1x1x1xf32> to vector<3x16x16xf32>
    %32 = arith.mulf %27, %31 : vector<3x16x16xf32>
    %c0_15 = arith.constant 0 : index
    %c0_16 = arith.constant 0 : index
    %c1 = arith.constant 1 : index
    %c0_17 = arith.constant 0 : index
    %c0_18 = arith.constant 0 : index
    %c0_19 = arith.constant 0 : index
    %33 = vector.load %arg3[%c0_15, %c0_16, %c1, %c0_17, %c0_18, %c0_19] : memref<1x3x3x3x16x16xf32, #tpu.memory_space<vmem>>, vector<1x1x1x3x16x16xf32>
    %34 = vector.shape_cast %33 : vector<1x1x1x3x16x16xf32> to vector<3x16x16xf32>
    %35 = vector.shape_cast %32 : vector<3x16x16xf32> to vector<1x1x1x3x16x16xf32>
    tpu.vector_store %arg3[%c0_15, %c0_16, %c1, %c0_17, %c0_18, %c0_19], %35 {strides = array<i32>} : memref<1x3x3x3x16x16xf32, #tpu.memory_space<vmem>>, vector<1x1x1x3x16x16xf32>,
    %c0_20 = arith.constant 0 : index
    %c0_21 = arith.constant 0 : index
    %c0_22 = arith.constant 0 : index
    %c32 = arith.constant 32 : index
    %36 = vector.load %arg2[%c0_20, %c0_21, %c0_22, %c32] : memref<1x4x48x48xf32, #tpu.memory_space<vmem>>, vector<1x4x16x16xf32>
    %37 = vector.shape_cast %36 : vector<1x4x16x16xf32> to vector<4x16x16xf32>
    %38 = vector.extract_strided_slice %37 {offsets = [3, 0, 0], sizes = [1, 16, 16], strides = [1, 1, 1]} : vector<4x16x16xf32> to vector<1x16x16xf32>
    %39 = vector.shape_cast %38 : vector<1x16x16xf32> to vector<16x16xf32>
    %40 = vector.shape_cast %39 : vector<16x16xf32> to vector<1x16x16xf32>
    %cst_23 = arith.constant dense<0.000000e+00> : vector<1xf32>
    %41 = vector.multi_reduction <add>, %40, %cst_23 [1, 2] : vector<1x16x16xf32> to vector<1xf32>
    %42 = vector.shape_cast %41 : vector<1xf32> to vector<1x1x1xf32>
    %43 = vector.extract %42[0, 0, 0] : f32 from vector<1x1x1xf32>
    %44 = vector.broadcast %43 : f32 to vector<1x1xf32>
    %45 = vector.extract_strided_slice %37 {offsets = [0, 0, 0], sizes = [3, 16, 16], strides = [1, 1, 1]} : vector<4x16x16xf32> to vector<3x16x16xf32>
    %cst_24 = arith.constant 3.906250e-03 : f32
    %46 = vector.broadcast %cst_24 : f32 to vector<1x1xf32>
    %47 = arith.mulf %44, %46 : vector<1x1xf32>
    %48 = vector.shape_cast %47 : vector<1x1xf32> to vector<1x1x1xf32>
    %49 = vector.broadcast %48 : vector<1x1x1xf32> to vector<3x16x16xf32>
    %50 = arith.mulf %45, %49 : vector<3x16x16xf32>
    %c0_25 = arith.constant 0 : index
    %c0_26 = arith.constant 0 : index
    %c2 = arith.constant 2 : index
    %c0_27 = arith.constant 0 : index
    %c0_28 = arith.constant 0 : index
    %c0_29 = arith.constant 0 : index
    %51 = vector.load %arg3[%c0_25, %c0_26, %c2, %c0_27, %c0_28, %c0_29] : memref<1x3x3x3x16x16xf32, #tpu.memory_space<vmem>>, vector<1x1x1x3x16x16xf32>
    %52 = vector.shape_cast %51 : vector<1x1x1x3x16x16xf32> to vector<3x16x16xf32>
    %53 = vector.shape_cast %50 : vector<3x16x16xf32> to vector<1x1x1x3x16x16xf32>
    tpu.vector_store %arg3[%c0_25, %c0_26, %c2, %c0_27, %c0_28, %c0_29], %53 {strides = array<i32>} : memref<1x3x3x3x16x16xf32, #tpu.memory_space<vmem>>, vector<1x1x1x3x16x16xf32>,
    %c0_30 = arith.constant 0 : index
    %c0_31 = arith.constant 0 : index
    %c16_32 = arith.constant 16 : index
    %c0_33 = arith.constant 0 : index
    %54 = vector.load %arg2[%c0_30, %c0_31, %c16_32, %c0_33] : memref<1x4x48x48xf32, #tpu.memory_space<vmem>>, vector<1x4x16x16xf32>
    %55 = vector.shape_cast %54 : vector<1x4x16x16xf32> to vector<4x16x16xf32>
    %56 = vector.extract_strided_slice %55 {offsets = [3, 0, 0], sizes = [1, 16, 16], strides = [1, 1, 1]} : vector<4x16x16xf32> to vector<1x16x16xf32>
    %57 = vector.shape_cast %56 : vector<1x16x16xf32> to vector<16x16xf32>
    %58 = vector.shape_cast %57 : vector<16x16xf32> to vector<1x16x16xf32>
    %cst_34 = arith.constant dense<0.000000e+00> : vector<1xf32>
    %59 = vector.multi_reduction <add>, %58, %cst_34 [1, 2] : vector<1x16x16xf32> to vector<1xf32>
    %60 = vector.shape_cast %59 : vector<1xf32> to vector<1x1x1xf32>
    %61 = vector.extract %60[0, 0, 0] : f32 from vector<1x1x1xf32>
    %62 = vector.broadcast %61 : f32 to vector<1x1xf32>
    %63 = vector.extract_strided_slice %55 {offsets = [0, 0, 0], sizes = [3, 16, 16], strides = [1, 1, 1]} : vector<4x16x16xf32> to vector<3x16x16xf32>
    %cst_35 = arith.constant 3.906250e-03 : f32
    %64 = vector.broadcast %cst_35 : f32 to vector<1x1xf32>
    %65 = arith.mulf %62, %64 : vector<1x1xf32>
    %66 = vector.shape_cast %65 : vector<1x1xf32> to vector<1x1x1xf32>
    %67 = vector.broadcast %66 : vector<1x1x1xf32> to vector<3x16x16xf32>
    %68 = arith.mulf %63, %67 : vector<3x16x16xf32>
    %c0_36 = arith.constant 0 : index
    %c1_37 = arith.constant 1 : index
    %c0_38 = arith.constant 0 : index
    %c0_39 = arith.constant 0 : index
    %c0_40 = arith.constant 0 : index
    %c0_41 = arith.constant 0 : index
    %69 = vector.load %arg3[%c0_36, %c1_37, %c0_38, %c0_39, %c0_40, %c0_41] : memref<1x3x3x3x16x16xf32, #tpu.memory_space<vmem>>, vector<1x1x1x3x16x16xf32>
    %70 = vector.shape_cast %69 : vector<1x1x1x3x16x16xf32> to vector<3x16x16xf32>
    %71 = vector.shape_cast %68 : vector<3x16x16xf32> to vector<1x1x1x3x16x16xf32>
    tpu.vector_store %arg3[%c0_36, %c1_37, %c0_38, %c0_39, %c0_40, %c0_41], %71 {strides = array<i32>} : memref<1x3x3x3x16x16xf32, #tpu.memory_space<vmem>>, vector<1x1x1x3x16x16xf32>,
    %c0_42 = arith.constant 0 : index
    %c0_43 = arith.constant 0 : index
    %c16_44 = arith.constant 16 : index
    %c16_45 = arith.constant 16 : index
    %72 = vector.load %arg2[%c0_42, %c0_43, %c16_44, %c16_45] : memref<1x4x48x48xf32, #tpu.memory_space<vmem>>, vector<1x4x16x16xf32>
    %73 = vector.shape_cast %72 : vector<1x4x16x16xf32> to vector<4x16x16xf32>
    %74 = vector.extract_strided_slice %73 {offsets = [3, 0, 0], sizes = [1, 16, 16], strides = [1, 1, 1]} : vector<4x16x16xf32> to vector<1x16x16xf32>
    %75 = vector.shape_cast %74 : vector<1x16x16xf32> to vector<16x16xf32>
    %76 = vector.shape_cast %75 : vector<16x16xf32> to vector<1x16x16xf32>
    %cst_46 = arith.constant dense<0.000000e+00> : vector<1xf32>
    %77 = vector.multi_reduction <add>, %76, %cst_46 [1, 2] : vector<1x16x16xf32> to vector<1xf32>
    %78 = vector.shape_cast %77 : vector<1xf32> to vector<1x1x1xf32>
    %79 = vector.extract %78[0, 0, 0] : f32 from vector<1x1x1xf32>
    %80 = vector.broadcast %79 : f32 to vector<1x1xf32>
    %81 = vector.extract_strided_slice %73 {offsets = [0, 0, 0], sizes = [3, 16, 16], strides = [1, 1, 1]} : vector<4x16x16xf32> to vector<3x16x16xf32>
    %cst_47 = arith.constant 3.906250e-03 : f32
    %82 = vector.broadcast %cst_47 : f32 to vector<1x1xf32>
    %83 = arith.mulf %80, %82 : vector<1x1xf32>
    %84 = vector.shape_cast %83 : vector<1x1xf32> to vector<1x1x1xf32>
    %85 = vector.broadcast %84 : vector<1x1x1xf32> to vector<3x16x16xf32>
    %86 = arith.mulf %81, %85 : vector<3x16x16xf32>
    %c0_48 = arith.constant 0 : index
    %c1_49 = arith.constant 1 : index
    %c1_50 = arith.constant 1 : index
    %c0_51 = arith.constant 0 : index
    %c0_52 = arith.constant 0 : index
    %c0_53 = arith.constant 0 : index
    %87 = vector.load %arg3[%c0_48, %c1_49, %c1_50, %c0_51, %c0_52, %c0_53] : memref<1x3x3x3x16x16xf32, #tpu.memory_space<vmem>>, vector<1x1x1x3x16x16xf32>
    %88 = vector.shape_cast %87 : vector<1x1x1x3x16x16xf32> to vector<3x16x16xf32>
    %89 = vector.shape_cast %86 : vector<3x16x16xf32> to vector<1x1x1x3x16x16xf32>
    tpu.vector_store %arg3[%c0_48, %c1_49, %c1_50, %c0_51, %c0_52, %c0_53], %89 {strides = array<i32>} : memref<1x3x3x3x16x16xf32, #tpu.memory_space<vmem>>, vector<1x1x1x3x16x16xf32>,
    %c0_54 = arith.constant 0 : index
    %c0_55 = arith.constant 0 : index
    %c16_56 = arith.constant 16 : index
    %c32_57 = arith.constant 32 : index
    %90 = vector.load %arg2[%c0_54, %c0_55, %c16_56, %c32_57] : memref<1x4x48x48xf32, #tpu.memory_space<vmem>>, vector<1x4x16x16xf32>
    %91 = vector.shape_cast %90 : vector<1x4x16x16xf32> to vector<4x16x16xf32>
    %92 = vector.extract_strided_slice %91 {offsets = [3, 0, 0], sizes = [1, 16, 16], strides = [1, 1, 1]} : vector<4x16x16xf32> to vector<1x16x16xf32>
    %93 = vector.shape_cast %92 : vector<1x16x16xf32> to vector<16x16xf32>
    %94 = vector.shape_cast %93 : vector<16x16xf32> to vector<1x16x16xf32>
    %cst_58 = arith.constant dense<0.000000e+00> : vector<1xf32>
    %95 = vector.multi_reduction <add>, %94, %cst_58 [1, 2] : vector<1x16x16xf32> to vector<1xf32>
    %96 = vector.shape_cast %95 : vector<1xf32> to vector<1x1x1xf32>
    %97 = vector.extract %96[0, 0, 0] : f32 from vector<1x1x1xf32>
    %98 = vector.broadcast %97 : f32 to vector<1x1xf32>
    %99 = vector.extract_strided_slice %91 {offsets = [0, 0, 0], sizes = [3, 16, 16], strides = [1, 1, 1]} : vector<4x16x16xf32> to vector<3x16x16xf32>
    %cst_59 = arith.constant 3.906250e-03 : f32
    %100 = vector.broadcast %cst_59 : f32 to vector<1x1xf32>
    %101 = arith.mulf %98, %100 : vector<1x1xf32>
    %102 = vector.shape_cast %101 : vector<1x1xf32> to vector<1x1x1xf32>
    %103 = vector.broadcast %102 : vector<1x1x1xf32> to vector<3x16x16xf32>
    %104 = arith.mulf %99, %103 : vector<3x16x16xf32>
    %c0_60 = arith.constant 0 : index
    %c1_61 = arith.constant 1 : index
    %c2_62 = arith.constant 2 : index
    %c0_63 = arith.constant 0 : index
    %c0_64 = arith.constant 0 : index
    %c0_65 = arith.constant 0 : index
    %105 = vector.load %arg3[%c0_60, %c1_61, %c2_62, %c0_63, %c0_64, %c0_65] : memref<1x3x3x3x16x16xf32, #tpu.memory_space<vmem>>, vector<1x1x1x3x16x16xf32>
    %106 = vector.shape_cast %105 : vector<1x1x1x3x16x16xf32> to vector<3x16x16xf32>
    %107 = vector.shape_cast %104 : vector<3x16x16xf32> to vector<1x1x1x3x16x16xf32>
    tpu.vector_store %arg3[%c0_60, %c1_61, %c2_62, %c0_63, %c0_64, %c0_65], %107 {strides = array<i32>} : memref<1x3x3x3x16x16xf32, #tpu.memory_space<vmem>>, vector<1x1x1x3x16x16xf32>,
    %c0_66 = arith.constant 0 : index
    %c0_67 = arith.constant 0 : index
    %c32_68 = arith.constant 32 : index
    %c0_69 = arith.constant 0 : index
    %108 = vector.load %arg2[%c0_66, %c0_67, %c32_68, %c0_69] : memref<1x4x48x48xf32, #tpu.memory_space<vmem>>, vector<1x4x16x16xf32>
    %109 = vector.shape_cast %108 : vector<1x4x16x16xf32> to vector<4x16x16xf32>
    %110 = vector.extract_strided_slice %109 {offsets = [3, 0, 0], sizes = [1, 16, 16], strides = [1, 1, 1]} : vector<4x16x16xf32> to vector<1x16x16xf32>
    %111 = vector.shape_cast %110 : vector<1x16x16xf32> to vector<16x16xf32>
    %112 = vector.shape_cast %111 : vector<16x16xf32> to vector<1x16x16xf32>
    %cst_70 = arith.constant dense<0.000000e+00> : vector<1xf32>
    %113 = vector.multi_reduction <add>, %112, %cst_70 [1, 2] : vector<1x16x16xf32> to vector<1xf32>
    %114 = vector.shape_cast %113 : vector<1xf32> to vector<1x1x1xf32>
    %115 = vector.extract %114[0, 0, 0] : f32 from vector<1x1x1xf32>
    %116 = vector.broadcast %115 : f32 to vector<1x1xf32>
    %117 = vector.extract_strided_slice %109 {offsets = [0, 0, 0], sizes = [3, 16, 16], strides = [1, 1, 1]} : vector<4x16x16xf32> to vector<3x16x16xf32>
    %cst_71 = arith.constant 3.906250e-03 : f32
    %118 = vector.broadcast %cst_71 : f32 to vector<1x1xf32>
    %119 = arith.mulf %116, %118 : vector<1x1xf32>
    %120 = vector.shape_cast %119 : vector<1x1xf32> to vector<1x1x1xf32>
    %121 = vector.broadcast %120 : vector<1x1x1xf32> to vector<3x16x16xf32>
    %122 = arith.mulf %117, %121 : vector<3x16x16xf32>
    %c0_72 = arith.constant 0 : index
    %c2_73 = arith.constant 2 : index
    %c0_74 = arith.constant 0 : index
    %c0_75 = arith.constant 0 : index
    %c0_76 = arith.constant 0 : index
    %c0_77 = arith.constant 0 : index
    %123 = vector.load %arg3[%c0_72, %c2_73, %c0_74, %c0_75, %c0_76, %c0_77] : memref<1x3x3x3x16x16xf32, #tpu.memory_space<vmem>>, vector<1x1x1x3x16x16xf32>
    %124 = vector.shape_cast %123 : vector<1x1x1x3x16x16xf32> to vector<3x16x16xf32>
    %125 = vector.shape_cast %122 : vector<3x16x16xf32> to vector<1x1x1x3x16x16xf32>
    tpu.vector_store %arg3[%c0_72, %c2_73, %c0_74, %c0_75, %c0_76, %c0_77], %125 {strides = array<i32>} : memref<1x3x3x3x16x16xf32, #tpu.memory_space<vmem>>, vector<1x1x1x3x16x16xf32>,
    %c0_78 = arith.constant 0 : index
    %c0_79 = arith.constant 0 : index
    %c32_80 = arith.constant 32 : index
    %c16_81 = arith.constant 16 : index
    %126 = vector.load %arg2[%c0_78, %c0_79, %c32_80, %c16_81] : memref<1x4x48x48xf32, #tpu.memory_space<vmem>>, vector<1x4x16x16xf32>
    %127 = vector.shape_cast %126 : vector<1x4x16x16xf32> to vector<4x16x16xf32>
    %128 = vector.extract_strided_slice %127 {offsets = [3, 0, 0], sizes = [1, 16, 16], strides = [1, 1, 1]} : vector<4x16x16xf32> to vector<1x16x16xf32>
    %129 = vector.shape_cast %128 : vector<1x16x16xf32> to vector<16x16xf32>
    %130 = vector.shape_cast %129 : vector<16x16xf32> to vector<1x16x16xf32>
    %cst_82 = arith.constant dense<0.000000e+00> : vector<1xf32>
    %131 = vector.multi_reduction <add>, %130, %cst_82 [1, 2] : vector<1x16x16xf32> to vector<1xf32>
    %132 = vector.shape_cast %131 : vector<1xf32> to vector<1x1x1xf32>
    %133 = vector.extract %132[0, 0, 0] : f32 from vector<1x1x1xf32>
    %134 = vector.broadcast %133 : f32 to vector<1x1xf32>
    %135 = vector.extract_strided_slice %127 {offsets = [0, 0, 0], sizes = [3, 16, 16], strides = [1, 1, 1]} : vector<4x16x16xf32> to vector<3x16x16xf32>
    %cst_83 = arith.constant 3.906250e-03 : f32
    %136 = vector.broadcast %cst_83 : f32 to vector<1x1xf32>
    %137 = arith.mulf %134, %136 : vector<1x1xf32>
    %138 = vector.shape_cast %137 : vector<1x1xf32> to vector<1x1x1xf32>
    %139 = vector.broadcast %138 : vector<1x1x1xf32> to vector<3x16x16xf32>
    %140 = arith.mulf %135, %139 : vector<3x16x16xf32>
    %c0_84 = arith.constant 0 : index
    %c2_85 = arith.constant 2 : index
    %c1_86 = arith.constant 1 : index
    %c0_87 = arith.constant 0 : index
    %c0_88 = arith.constant 0 : index
    %c0_89 = arith.constant 0 : index
    %141 = vector.load %arg3[%c0_84, %c2_85, %c1_86, %c0_87, %c0_88, %c0_89] : memref<1x3x3x3x16x16xf32, #tpu.memory_space<vmem>>, vector<1x1x1x3x16x16xf32>
    %142 = vector.shape_cast %141 : vector<1x1x1x3x16x16xf32> to vector<3x16x16xf32>
    %143 = vector.shape_cast %140 : vector<3x16x16xf32> to vector<1x1x1x3x16x16xf32>
    tpu.vector_store %arg3[%c0_84, %c2_85, %c1_86, %c0_87, %c0_88, %c0_89], %143 {strides = array<i32>} : memref<1x3x3x3x16x16xf32, #tpu.memory_space<vmem>>, vector<1x1x1x3x16x16xf32>,
    %c0_90 = arith.constant 0 : index
    %c0_91 = arith.constant 0 : index
    %c32_92 = arith.constant 32 : index
    %c32_93 = arith.constant 32 : index
    %144 = vector.load %arg2[%c0_90, %c0_91, %c32_92, %c32_93] : memref<1x4x48x48xf32, #tpu.memory_space<vmem>>, vector<1x4x16x16xf32>
    %145 = vector.shape_cast %144 : vector<1x4x16x16xf32> to vector<4x16x16xf32>
    %146 = vector.extract_strided_slice %145 {offsets = [3, 0, 0], sizes = [1, 16, 16], strides = [1, 1, 1]} : vector<4x16x16xf32> to vector<1x16x16xf32>
    %147 = vector.shape_cast %146 : vector<1x16x16xf32> to vector<16x16xf32>
    %148 = vector.shape_cast %147 : vector<16x16xf32> to vector<1x16x16xf32>
    %cst_94 = arith.constant dense<0.000000e+00> : vector<1xf32>
    %149 = vector.multi_reduction <add>, %148, %cst_94 [1, 2] : vector<1x16x16xf32> to vector<1xf32>
    %150 = vector.shape_cast %149 : vector<1xf32> to vector<1x1x1xf32>
    %151 = vector.extract %150[0, 0, 0] : f32 from vector<1x1x1xf32>
    %152 = vector.broadcast %151 : f32 to vector<1x1xf32>
    %153 = vector.extract_strided_slice %145 {offsets = [0, 0, 0], sizes = [3, 16, 16], strides = [1, 1, 1]} : vector<4x16x16xf32> to vector<3x16x16xf32>
    %cst_95 = arith.constant 3.906250e-03 : f32
    %154 = vector.broadcast %cst_95 : f32 to vector<1x1xf32>
    %155 = arith.mulf %152, %154 : vector<1x1xf32>
    %156 = vector.shape_cast %155 : vector<1x1xf32> to vector<1x1x1xf32>
    %157 = vector.broadcast %156 : vector<1x1x1xf32> to vector<3x16x16xf32>
    %158 = arith.mulf %153, %157 : vector<3x16x16xf32>
    %c0_96 = arith.constant 0 : index
    %c2_97 = arith.constant 2 : index
    %c2_98 = arith.constant 2 : index
    %c0_99 = arith.constant 0 : index
    %c0_100 = arith.constant 0 : index
    %c0_101 = arith.constant 0 : index
    %159 = vector.load %arg3[%c0_96, %c2_97, %c2_98, %c0_99, %c0_100, %c0_101] : memref<1x3x3x3x16x16xf32, #tpu.memory_space<vmem>>, vector<1x1x1x3x16x16xf32>
    %160 = vector.shape_cast %159 : vector<1x1x1x3x16x16xf32> to vector<3x16x16xf32>
    %161 = vector.shape_cast %158 : vector<3x16x16xf32> to vector<1x1x1x3x16x16xf32>
    tpu.vector_store %arg3[%c0_96, %c2_97, %c2_98, %c0_99, %c0_100, %c0_101], %161 {strides = array<i32>} : memref<1x3x3x3x16x16xf32, #tpu.memory_space<vmem>>, vector<1x1x1x3x16x16xf32>,
    return
  }
  func.func @transform_0(%arg0: i32, %arg1: i32) -> (i32, i32, i32, i32) {
    %c0_i32 = arith.constant 0 : i32
    %c0_i32_0 = arith.constant 0 : i32
    %c0_i32_1 = arith.constant 0 : i32
    return %arg0, %c0_i32, %arg1, %c0_i32_0 : i32, i32, i32, i32
  }
  func.func @transform_1(%arg0: i32, %arg1: i32) -> (i32, i32, i32, i32, i32, i32) {
    %c0_i32 = arith.constant 0 : i32
    %c0_i32_0 = arith.constant 0 : i32
    %c0_i32_1 = arith.constant 0 : i32
    %c0_i32_2 = arith.constant 0 : i32
    %c0_i32_3 = arith.constant 0 : i32
    return %arg0, %arg1, %c0_i32, %c0_i32_0, %c0_i32_1, %c0_i32_2 : i32, i32, i32, i32, i32, i32
  }
}

</mosaic_0001>

<llo_original>
// kernel: tpu_custom_call.1
$region0: #{tpu_custom_call.1}
  #allocation0 [shape = 'u32[]', space=smem, size = 0x4, offset = 0x4, fixed_abs, tag = 'smem constant byte address 0x4 - core index']
  #allocation1 [shape = 'u32[144,128]{1,0:T(1,128)}', space=vmem, size = 0x12000, scoped, tag = 'internal scratch']
  %s0 = inlined_call_operand.hbm [shape: f32[2,4,48,48], index: 0, kind: input, shape index: {}]
  %s1 = inlined_call_operand.hbm [shape: f32[2,3,3,3,16,16], index: 1, kind: output, shape index: {}]
  %s2 = sld [smem:[#allocation0]]
  $region41: #{tpu_custom_call.1} parent=0
    _
  %s4 = ssub.s32 1, %s2
  %s5 = scalar_select 0, %s4, %s2
  $region1: #{tpu_custom_call.1} parent=0
    #allocation2 [shape = 'u8[196608]{0}', space=vmem, size = 0x30000, scoped, tag = 'input window, operand 0']
    #allocation3 [shape = 's32[2]{0}', space=sflag, size = 0x8, scoped, tag = 'scoped memory for tpu_custom_call.1']
    #allocation4 [shape = 's32[2]{0}', space=sflag, size = 0x8, scoped, tag = 'scoped memory for tpu_custom_call.1']
    #allocation5 [shape = 'u8[442368]{0}', space=vmem, size = 0x6c000, scoped, tag = 'output window, operand 0']
    %6 = vsyncpa [#allocation3], 0
    %s7 = scalar_lea.sflag [#allocation3], 1
    %8 = vsyncpa %s7, 0
    %9 = vsyncpa [#allocation4], 0
    %s10 = scalar_lea.sflag [#allocation4], 1
    %11 = vsyncpa %s10, 0
    loop: start=0, step=1, limit=4
    $region2: #{tpu_custom_call.1} parent=1 // loop_pre_header
      _
    $region3: #{tpu_custom_call.1} parent=1 // loop_header
      %s13 = sphi 0, %s17
      %p14 = scmp.ge.s32.totalorder %s13, 4
      %s20 = sphi 0, %s32
      %s21 = sphi 0, %s28
      %s22 = sphi 0, %s20
      %s23 = sphi 0, %s21
      %s24 = sphi 0, %s22
      %s25 = sphi 0, %s23
      %s37 = sphi 0, %s39
      %s40 = sphi 0, %s37
      %s41 = sphi 0, %s40
      %s57 = sphi 0, %s41
      %s65 = sphi 0, %s67
      %s68 = sphi 0, %s65
      %s69 = sphi 0, %s68
      %s85 = sphi 0, %s69
    $region4: #{tpu_custom_call.1} parent=1 // loop_header_branch
      %16 = sbr.rel (%p14) target = $region8
    $region5: #{tpu_custom_call.1} parent=1 // loop_body
      %s18 = ssub.s32 %s13, 1
      %s19 = ssub.s32 %s13, 2
      %s26 = sadd.s32 1, %s21
      %p27 = scmp.ge.s32.totalorder %s26, 1
      %s28 = scalar_select %p27, 0, %s26
      %s29 = sadd.s32 1, %s20
      %s30 = scalar_select %p27, %s29, %s20
      %p31 = scmp.ge.s32.totalorder %s30, 2
      %s32 = scalar_select %p31, 0, %s30
      %s33 = ssub.s32 %s20, %s32
      %s34 = ssub.s32 %s21, %s28
      %s35 = sor.u32 %s33, %s34
      %p36 = scmp.eq.s32.totalorder %s35, 0
      %s38 = sadd.s32 %s37, 1
      %s39 = scalar_select %p36, %s37, %s38
      %p42 = pneg %p36
      %p43 = scmp.eq.s32.totalorder %s13, 1
      %p44 = por %p42, %p43
      %p45 = scmp.ne.s32.totalorder %s37, %s40
      %p46 = scmp.eq.s32.totalorder %s13, 0
      %p47 = por %p45, %p46
      %p48 = scmp.ne.s32.totalorder %s37, %s40
      %p49 = scmp.eq.s32.totalorder %s18, 1
      %p50 = por %p48, %p49
      %p51 = scmp.ne.s32.totalorder %s40, %s41
      %p52 = scmp.eq.s32.totalorder %s18, 0
      %p53 = por %p51, %p52
      %p54 = scmp.ne.s32.totalorder %s40, %s41
      %p55 = scmp.eq.s32.totalorder %s19, 1
      %p56 = por %p54, %p55
      %p58 = scmp.ne.s32.totalorder %s41, %s57
      %p59 = scmp.eq.s32.totalorder %s19, 0
      %p60 = por %p58, %p59
      %s61 = ssub.s32 %s20, %s32
      %s62 = ssub.s32 %s21, %s28
      %s63 = sor.u32 %s61, %s62
      %p64 = scmp.eq.s32.totalorder %s63, 0
      %s66 = sadd.s32 %s65, 1
      %s67 = scalar_select %p64, %s65, %s66
      %p70 = pneg %p64
      %p71 = scmp.eq.s32.totalorder %s13, 1
      %p72 = por %p70, %p71
      %p73 = scmp.ne.s32.totalorder %s65, %s68
      %p74 = scmp.eq.s32.totalorder %s13, 0
      %p75 = por %p73, %p74
      %p76 = scmp.ne.s32.totalorder %s65, %s68
      %p77 = scmp.eq.s32.totalorder %s18, 1
      %p78 = por %p76, %p77
      %p79 = scmp.ne.s32.totalorder %s68, %s69
      %p80 = scmp.eq.s32.totalorder %s18, 0
      %p81 = por %p79, %p80
      %p82 = scmp.ne.s32.totalorder %s68, %s69
      %p83 = scmp.eq.s32.totalorder %s19, 1
      %p84 = por %p82, %p83
      %p86 = scmp.ne.s32.totalorder %s69, %s85
      %p87 = scmp.eq.s32.totalorder %s19, 0
      %p88 = por %p86, %p87
      %p89 = scmp.le.s32.totalorder 1, %s13
      %p90 = scmp.lt.s32.totalorder %s13, 3
      %p91 = pnand %p89, %p90
      %p92 = pneg %p91
      // Predicated region
      $region9: #{tpu_custom_call.1} parent=5 // pred_check
        _
      $region10: #{tpu_custom_call.1} parent=5 // pred_check_branch
        %94 = sbr.rel (%p91) target = $region12
      $region11: #{tpu_custom_call.1} parent=5 // pred_region
        %s95 = ssub.s32 %s13, 1
      $region12: #{tpu_custom_call.1} parent=5 // pred_fallthru
        _
      %p96 = scmp.lt.s32.totalorder %s13, 2
      // Predicated region
      $region13: #{tpu_custom_call.1} parent=5 // pred_check
        %p97 = pneg %p96
      $region14: #{tpu_custom_call.1} parent=5 // pred_check_branch
        %99 = sbr.rel (%p97) target = $region16
      $region15: #{tpu_custom_call.1} parent=5 // pred_region
        // Predicated region
        $region17: #{tpu_custom_call.1} parent=15 // pred_check
          %p100 = pneg %p47
        $region18: #{tpu_custom_call.1} parent=15 // pred_check_branch
          %102 = sbr.rel (%p100) target = $region20
        $region19: #{tpu_custom_call.1} parent=15 // pred_region
          %s103 = sand.u32 %s37, 1
          %s104 = scalar_lea.sflag [#allocation3], %s103
          %s105 = sand.u32 %s37, 1
          %s106 = smul.addr %s105, 192
          %s107 = scalar_lea.vmem [#allocation2], %s106
          %s108 = smul.u32 6, %s21
          %s110 = ssub.s32 3072, 3072
          %111 = vsyncadd %s104, %s110
          %s112 = smul.addr %s20, 24
          %s113 = sadd.s32 %s108, %s112
          %s114 = smul.addr %s113, 128
          %s115 = scalar_lea.hbm %s0, %s114
          %s116 = sshll.u32 %s107, 4
          %s117 = int_to_ptr.vmem [resolvable:$true] %s116
          %122 = dma.hbm_to_vmem [thread:$0]  %s115, 3072, %s117, %s104, 128, 128, 8
        $region20: #{tpu_custom_call.1} parent=15 // pred_fallthru
          _
      $region16: #{tpu_custom_call.1} parent=5 // pred_fallthru
        _
      %p123 = scmp.le.s32.totalorder 1, %s13
      %p124 = scmp.lt.s32.totalorder %s13, 3
      %p125 = pnand %p123, %p124
      %p126 = pneg %p125
      // Predicated region
      $region21: #{tpu_custom_call.1} parent=5 // pred_check
        _
      $region22: #{tpu_custom_call.1} parent=5 // pred_check_branch
        %128 = sbr.rel (%p125) target = $region24
      $region23: #{tpu_custom_call.1} parent=5 // pred_region
        %s129 = ssub.s32 %s13, 1
        %s130 = sand.u32 %s40, 1
        %s131 = scalar_lea.sflag [#allocation3], %s130
        %s132 = sand.u32 %s40, 1
        %s133 = smul.addr %s132, 192
        %s134 = scalar_lea.vmem [#allocation2], %s133
        // Predicated region
        $region25: #{tpu_custom_call.1} parent=23 // pred_check
          %p135 = pneg %p53
        $region26: #{tpu_custom_call.1} parent=23 // pred_check_branch
          %137 = sbr.rel (%p135) target = $region28
        $region27: #{tpu_custom_call.1} parent=23 // pred_region
          %138 = dma.done %s131, 3072
        $region28: #{tpu_custom_call.1} parent=23 // pred_fallthru
          _
        %s139 = sand.u32 %s40, 1
        %s140 = scalar_lea.sflag [#allocation3], %s139
        %s141 = sand.u32 %s40, 1
        %s142 = smul.addr %s141, 192
        %s143 = scalar_lea.vmem [#allocation2], %s142
        %p144 = pneg %p53
        %p145 = pneg %p50
        %p146 = pneg %p81
        %p147 = pneg %p78
        %s148 = sand.u32 %s68, 1
        %s149 = scalar_lea.sflag [#allocation4], %s148
        %s150 = sand.u32 %s68, 1
        %s151 = smul.addr %s150, 432
        %s152 = scalar_lea.vmem [#allocation5], %s151
        %s153 = smul.u32 6, %s23
        %s154 = smul.u32 3, %s23
        %v155 = vld [vmem:[%s134] sm:$0xff]
        %v156 = vld [vmem:[%s134 + $0x8] sm:$0xff]
        %v157 = vld [vmem:[%s134 + $0x30] sm:$0xff]
        %v158 = vld [vmem:[%s134 + $0x38] sm:$0xff]
        %v159 = vld [vmem:[%s134 + $0x60] sm:$0xff]
        %v160 = vld [vmem:[%s134 + $0x68] sm:$0xff]
        %v161 = vld [vmem:[%s134 + $0x90] sm:$0xff]
        %v162 = vld [vmem:[%s134 + $0x98] sm:$0xff]
        %vm163 = vcmask 130048
        %v164 = vsel %vm163, %v161, 0.0
        %v165 = vsel %vm163, %v162, 0.0
        %v166 = vadd.f32 %v164, %v165
        %167 = vadd.xlane.f32.xlu0 %v166
        %v168 = vpop.xlane.xlu0 %167
        %v169 = vrot.slane %v168, 4
        %v170 = vadd.f32 %v168, %v169
        %v171 = vrot.slane %v170, 2
        %v172 = vadd.f32 %v170, %v171
        %v173 = vrot.slane %v172, 1
        %v174 = vadd.f32 %v172, %v173
        %s175 = vtos %v174
        %v176 = vstv %s175
        %v177 = vmul.f32 %v176, 0.00390625
        %v178 = vmul.f32 %v155, %v177
        %v179 = vmul.f32 %v156, %v177
        %v180 = vmul.f32 %v157, %v177
        %v181 = vmul.f32 %v158, %v177
        %v182 = vmul.f32 %v159, %v177
        %v183 = vmul.f32 %v160, %v177
        %184 = vst.msk [vmem:[%s152] sm:$0xff] %vm163, %v178
        %185 = vst.msk [vmem:[%s152 + $0x8] sm:$0xff] %vm163, %v179
        %186 = vst.msk [vmem:[%s152 + $0x10] sm:$0xff] %vm163, %v180
        %187 = vst.msk [vmem:[%s152 + $0x18] sm:$0xff] %vm163, %v181
        %188 = vst.msk [vmem:[%s152 + $0x20] sm:$0xff] %vm163, %v182
        %189 = vst.msk [vmem:[%s152 + $0x28] sm:$0xff] %vm163, %v183
        %v190 = vld [vmem:[%s134] sm:$0xff]
        %v191 = vld [vmem:[%s134 + $0x8] sm:$0xff]
        %v192 = vld [vmem:[%s134 + $0x30] sm:$0xff]
        %v193 = vld [vmem:[%s134 + $0x38] sm:$0xff]
        %v194 = vld [vmem:[%s134 + $0x60] sm:$0xff]
        %v195 = vld [vmem:[%s134 + $0x68] sm:$0xff]
        %v196 = vld [vmem:[%s134 + $0x90] sm:$0xff]
        %v197 = vld [vmem:[%s134 + $0x98] sm:$0xff]
        %200 = vrot.lane.b32.xlu0 %v196, 112
        %v201 = vpop.permute.xlu0 %200
        %202 = vrot.lane.b32.xlu0 %v197, 112
        %v203 = vpop.permute.xlu0 %202
        %v206 = vsel %vm163, %v201, 0.0
        %v207 = vsel %vm163, %v203, 0.0
        %v208 = vadd.f32 %v206, %v207
        %209 = vadd.xlane.f32.xlu0 %v208
        %v210 = vpop.xlane.xlu0 %209
        %v211 = vrot.slane %v210, 4
        %v212 = vadd.f32 %v210, %v211
        %v213 = vrot.slane %v212, 2
        %v214 = vadd.f32 %v212, %v213
        %v215 = vrot.slane %v214, 1
        %v216 = vadd.f32 %v214, %v215
        %s217 = vtos %v216
        %v218 = vstv %s217
        %v219 = vmul.f32 %v218, 0.00390625
        %v220 = vmul.f32 %v190, %v219
        %v221 = vmul.f32 %v191, %v219
        %v222 = vmul.f32 %v192, %v219
        %v223 = vmul.f32 %v193, %v219
        %v224 = vmul.f32 %v194, %v219
        %v225 = vmul.f32 %v195, %v219
        %232 = vrot.lane.b32.xlu0 %v220, 112
        %v233 = vpop.permute.xlu0 %232
        %234 = vrot.lane.b32.xlu0 %v221, 112
        %v235 = vpop.permute.xlu0 %234
        %236 = vrot.lane.b32.xlu0 %v222, 112
        %v237 = vpop.permute.xlu0 %236
        %238 = vrot.lane.b32.xlu0 %v223, 112
        %v239 = vpop.permute.xlu0 %238
        %240 = vrot.lane.b32.xlu0 %v224, 112
        %v241 = vpop.permute.xlu0 %240
        %242 = vrot.lane.b32.xlu0 %v225, 112
        %v243 = vpop.permute.xlu0 %242
        %s250 = scalar_lea.vmem %s152, 48 [#allocation5]
        %251 = vst.msk [vmem:[%s250] sm:$0xff] %vm163, %v233
        %252 = vst.msk [vmem:[%s250 + $0x8] sm:$0xff] %vm163, %v235
        %253 = vst.msk [vmem:[%s250 + $0x10] sm:$0xff] %vm163, %v237
        %254 = vst.msk [vmem:[%s250 + $0x18] sm:$0xff] %vm163, %v239
        %255 = vst.msk [vmem:[%s250 + $0x20] sm:$0xff] %vm163, %v241
        %256 = vst.msk [vmem:[%s250 + $0x28] sm:$0xff] %vm163, %v243
        %v257 = vld [vmem:[%s134] sm:$0xff]
        %v258 = vld [vmem:[%s134 + $0x8] sm:$0xff]
        %v259 = vld [vmem:[%s134 + $0x30] sm:$0xff]
        %v260 = vld [vmem:[%s134 + $0x38] sm:$0xff]
        %v261 = vld [vmem:[%s134 + $0x60] sm:$0xff]
        %v262 = vld [vmem:[%s134 + $0x68] sm:$0xff]
        %v263 = vld [vmem:[%s134 + $0x90] sm:$0xff]
        %v264 = vld [vmem:[%s134 + $0x98] sm:$0xff]
        %267 = vrot.lane.b32.xlu0 %v263, 96
        %v268 = vpop.permute.xlu0 %267
        %269 = vrot.lane.b32.xlu0 %v264, 96
        %v270 = vpop.permute.xlu0 %269
        %v273 = vsel %vm163, %v268, 0.0
        %v274 = vsel %vm163, %v270, 0.0
        %v275 = vadd.f32 %v273, %v274
        %276 = vadd.xlane.f32.xlu0 %v275
        %v277 = vpop.xlane.xlu0 %276
        %v278 = vrot.slane %v277, 4
        %v279 = vadd.f32 %v277, %v278
        %v280 = vrot.slane %v279, 2
        %v281 = vadd.f32 %v279, %v280
        %v282 = vrot.slane %v281, 1
        %v283 = vadd.f32 %v281, %v282
        %s284 = vtos %v283
        %v285 = vstv %s284
        %v286 = vmul.f32 %v285, 0.00390625
        %v287 = vmul.f32 %v257, %v286
        %v288 = vmul.f32 %v258, %v286
        %v289 = vmul.f32 %v259, %v286
        %v290 = vmul.f32 %v260, %v286
        %v291 = vmul.f32 %v261, %v286
        %v292 = vmul.f32 %v262, %v286
        %299 = vrot.lane.b32.xlu0 %v287, 96
        %v300 = vpop.permute.xlu0 %299
        %301 = vrot.lane.b32.xlu0 %v288, 96
        %v302 = vpop.permute.xlu0 %301
        %303 = vrot.lane.b32.xlu0 %v289, 96
        %v304 = vpop.permute.xlu0 %303
        %305 = vrot.lane.b32.xlu0 %v290, 96
        %v306 = vpop.permute.xlu0 %305
        %307 = vrot.lane.b32.xlu0 %v291, 96
        %v308 = vpop.permute.xlu0 %307
        %309 = vrot.lane.b32.xlu0 %v292, 96
        %v310 = vpop.permute.xlu0 %309
        %s317 = scalar_lea.vmem %s152, 96 [#allocation5]
        %318 = vst.msk [vmem:[%s317] sm:$0xff] %vm163, %v300
        %319 = vst.msk [vmem:[%s317 + $0x8] sm:$0xff] %vm163, %v302
        %320 = vst.msk [vmem:[%s317 + $0x10] sm:$0xff] %vm163, %v304
        %321 = vst.msk [vmem:[%s317 + $0x18] sm:$0xff] %vm163, %v306
        %322 = vst.msk [vmem:[%s317 + $0x20] sm:$0xff] %vm163, %v308
        %323 = vst.msk [vmem:[%s317 + $0x28] sm:$0xff] %vm163, %v310
        %v324 = vld [vmem:[%s134 + $0x10] sm:$0xff]
        %v325 = vld [vmem:[%s134 + $0x18] sm:$0xff]
        %v326 = vld [vmem:[%s134 + $0x40] sm:$0xff]
        %v327 = vld [vmem:[%s134 + $0x48] sm:$0xff]
        %v328 = vld [vmem:[%s134 + $0x70] sm:$0xff]
        %v329 = vld [vmem:[%s134 + $0x78] sm:$0xff]
        %v330 = vld [vmem:[%s134 + $0xa0] sm:$0xff]
        %v331 = vld [vmem:[%s134 + $0xa8] sm:$0xff]
        %v332 = vsel %vm163, %v330, 0.0
        %v333 = vsel %vm163, %v331, 0.0
        %v334 = vadd.f32 %v332, %v333
        %335 = vadd.xlane.f32.xlu0 %v334
        %v336 = vpop.xlane.xlu0 %335
        %v337 = vrot.slane %v336, 4
        %v338 = vadd.f32 %v336, %v337
        %v339 = vrot.slane %v338, 2
        %v340 = vadd.f32 %v338, %v339
        %v341 = vrot.slane %v340, 1
        %v342 = vadd.f32 %v340, %v341
        %s343 = vtos %v342
        %v344 = vstv %s343
        %v345 = vmul.f32 %v344, 0.00390625
        %v346 = vmul.f32 %v324, %v345
        %v347 = vmul.f32 %v325, %v345
        %v348 = vmul.f32 %v326, %v345
        %v349 = vmul.f32 %v327, %v345
        %v350 = vmul.f32 %v328, %v345
        %v351 = vmul.f32 %v329, %v345
        %s352 = scalar_lea.vmem %s152, 144 [#allocation5]
        %353 = vst.msk [vmem:[%s352] sm:$0xff] %vm163, %v346
        %354 = vst.msk [vmem:[%s352 + $0x8] sm:$0xff] %vm163, %v347
        %355 = vst.msk [vmem:[%s352 + $0x10] sm:$0xff] %vm163, %v348
        %356 = vst.msk [vmem:[%s352 + $0x18] sm:$0xff] %vm163, %v349
        %357 = vst.msk [vmem:[%s352 + $0x20] sm:$0xff] %vm163, %v350
        %358 = vst.msk [vmem:[%s352 + $0x28] sm:$0xff] %vm163, %v351
        %v359 = vld [vmem:[%s134 + $0x10] sm:$0xff]
        %v360 = vld [vmem:[%s134 + $0x18] sm:$0xff]
        %v361 = vld [vmem:[%s134 + $0x40] sm:$0xff]
        %v362 = vld [vmem:[%s134 + $0x48] sm:$0xff]
        %v363 = vld [vmem:[%s134 + $0x70] sm:$0xff]
        %v364 = vld [vmem:[%s134 + $0x78] sm:$0xff]
        %v365 = vld [vmem:[%s134 + $0xa0] sm:$0xff]
        %v366 = vld [vmem:[%s134 + $0xa8] sm:$0xff]
        %369 = vrot.lane.b32.xlu0 %v365, 112
        %v370 = vpop.permute.xlu0 %369
        %371 = vrot.lane.b32.xlu0 %v366, 112
        %v372 = vpop.permute.xlu0 %371
        %v375 = vsel %vm163, %v370, 0.0
        %v376 = vsel %vm163, %v372, 0.0
        %v377 = vadd.f32 %v375, %v376
        %378 = vadd.xlane.f32.xlu0 %v377
        %v379 = vpop.xlane.xlu0 %378
        %v380 = vrot.slane %v379, 4
        %v381 = vadd.f32 %v379, %v380
        %v382 = vrot.slane %v381, 2
        %v383 = vadd.f32 %v381, %v382
        %v384 = vrot.slane %v383, 1
        %v385 = vadd.f32 %v383, %v384
        %s386 = vtos %v385
        %v387 = vstv %s386
        %v388 = vmul.f32 %v387, 0.00390625
        %v389 = vmul.f32 %v359, %v388
        %v390 = vmul.f32 %v360, %v388
        %v391 = vmul.f32 %v361, %v388
        %v392 = vmul.f32 %v362, %v388
        %v393 = vmul.f32 %v363, %v388
        %v394 = vmul.f32 %v364, %v388
        %401 = vrot.lane.b32.xlu0 %v389, 112
        %v402 = vpop.permute.xlu0 %401
        %403 = vrot.lane.b32.xlu0 %v390, 112
        %v404 = vpop.permute.xlu0 %403
        %405 = vrot.lane.b32.xlu0 %v391, 112
        %v406 = vpop.permute.xlu0 %405
        %407 = vrot.lane.b32.xlu0 %v392, 112
        %v408 = vpop.permute.xlu0 %407
        %409 = vrot.lane.b32.xlu0 %v393, 112
        %v410 = vpop.permute.xlu0 %409
        %411 = vrot.lane.b32.xlu0 %v394, 112
        %v412 = vpop.permute.xlu0 %411
        %s419 = scalar_lea.vmem %s152, 192 [#allocation5]
        %420 = vst.msk [vmem:[%s419] sm:$0xff] %vm163, %v402
        %421 = vst.msk [vmem:[%s419 + $0x8] sm:$0xff] %vm163, %v404
        %422 = vst.msk [vmem:[%s419 + $0x10] sm:$0xff] %vm163, %v406
        %423 = vst.msk [vmem:[%s419 + $0x18] sm:$0xff] %vm163, %v408
        %424 = vst.msk [vmem:[%s419 + $0x20] sm:$0xff] %vm163, %v410
        %425 = vst.msk [vmem:[%s419 + $0x28] sm:$0xff] %vm163, %v412
        %v426 = vld [vmem:[%s134 + $0x10] sm:$0xff]
        %v427 = vld [vmem:[%s134 + $0x18] sm:$0xff]
        %v428 = vld [vmem:[%s134 + $0x40] sm:$0xff]
        %v429 = vld [vmem:[%s134 + $0x48] sm:$0xff]
        %v430 = vld [vmem:[%s134 + $0x70] sm:$0xff]
        %v431 = vld [vmem:[%s134 + $0x78] sm:$0xff]
        %v432 = vld [vmem:[%s134 + $0xa0] sm:$0xff]
        %v433 = vld [vmem:[%s134 + $0xa8] sm:$0xff]
        %436 = vrot.lane.b32.xlu0 %v432, 96
        %v437 = vpop.permute.xlu0 %436
        %438 = vrot.lane.b32.xlu0 %v433, 96
        %v439 = vpop.permute.xlu0 %438
        %v442 = vsel %vm163, %v437, 0.0
        %v443 = vsel %vm163, %v439, 0.0
        %v444 = vadd.f32 %v442, %v443
        %445 = vadd.xlane.f32.xlu0 %v444
        %v446 = vpop.xlane.xlu0 %445
        %v447 = vrot.slane %v446, 4
        %v448 = vadd.f32 %v446, %v447
        %v449 = vrot.slane %v448, 2
        %v450 = vadd.f32 %v448, %v449
        %v451 = vrot.slane %v450, 1
        %v452 = vadd.f32 %v450, %v451
        %s453 = vtos %v452
        %v454 = vstv %s453
        %v455 = vmul.f32 %v454, 0.00390625
        %v456 = vmul.f32 %v426, %v455
        %v457 = vmul.f32 %v427, %v455
        %v458 = vmul.f32 %v428, %v455
        %v459 = vmul.f32 %v429, %v455
        %v460 = vmul.f32 %v430, %v455
        %v461 = vmul.f32 %v431, %v455
        %468 = vrot.lane.b32.xlu0 %v456, 96
        %v469 = vpop.permute.xlu0 %468
        %470 = vrot.lane.b32.xlu0 %v457, 96
        %v471 = vpop.permute.xlu0 %470
        %472 = vrot.lane.b32.xlu0 %v458, 96
        %v473 = vpop.permute.xlu0 %472
        %474 = vrot.lane.b32.xlu0 %v459, 96
        %v475 = vpop.permute.xlu0 %474
        %476 = vrot.lane.b32.xlu0 %v460, 96
        %v477 = vpop.permute.xlu0 %476
        %478 = vrot.lane.b32.xlu0 %v461, 96
        %v479 = vpop.permute.xlu0 %478
        %s486 = scalar_lea.vmem %s152, 240 [#allocation5]
        %487 = vst.msk [vmem:[%s486] sm:$0xff] %vm163, %v469
        %488 = vst.msk [vmem:[%s486 + $0x8] sm:$0xff] %vm163, %v471
        %489 = vst.msk [vmem:[%s486 + $0x10] sm:$0xff] %vm163, %v473
        %490 = vst.msk [vmem:[%s486 + $0x18] sm:$0xff] %vm163, %v475
        %491 = vst.msk [vmem:[%s486 + $0x20] sm:$0xff] %vm163, %v477
        %492 = vst.msk [vmem:[%s486 + $0x28] sm:$0xff] %vm163, %v479
        %v493 = vld [vmem:[%s134 + $0x20] sm:$0xff]
        %v494 = vld [vmem:[%s134 + $0x28] sm:$0xff]
        %v495 = vld [vmem:[%s134 + $0x50] sm:$0xff]
        %v496 = vld [vmem:[%s134 + $0x58] sm:$0xff]
        %v497 = vld [vmem:[%s134 + $0x80] sm:$0xff]
        %v498 = vld [vmem:[%s134 + $0x88] sm:$0xff]
        %v499 = vld [vmem:[%s134 + $0xb0] sm:$0xff]
        %v500 = vld [vmem:[%s134 + $0xb8] sm:$0xff]
        %v501 = vsel %vm163, %v499, 0.0
        %v502 = vsel %vm163, %v500, 0.0
        %v503 = vadd.f32 %v501, %v502
        %504 = vadd.xlane.f32.xlu0 %v503
        %v505 = vpop.xlane.xlu0 %504
        %v506 = vrot.slane %v505, 4
        %v507 = vadd.f32 %v505, %v506
        %v508 = vrot.slane %v507, 2
        %v509 = vadd.f32 %v507, %v508
        %v510 = vrot.slane %v509, 1
        %v511 = vadd.f32 %v509, %v510
        %s512 = vtos %v511
        %v513 = vstv %s512
        %v514 = vmul.f32 %v513, 0.00390625
        %v515 = vmul.f32 %v493, %v514
        %v516 = vmul.f32 %v494, %v514
        %v517 = vmul.f32 %v495, %v514
        %v518 = vmul.f32 %v496, %v514
        %v519 = vmul.f32 %v497, %v514
        %v520 = vmul.f32 %v498, %v514
        %s521 = scalar_lea.vmem %s152, 288 [#allocation5]
        %522 = vst.msk [vmem:[%s521] sm:$0xff] %vm163, %v515
        %523 = vst.msk [vmem:[%s521 + $0x8] sm:$0xff] %vm163, %v516
        %524 = vst.msk [vmem:[%s521 + $0x10] sm:$0xff] %vm163, %v517
        %525 = vst.msk [vmem:[%s521 + $0x18] sm:$0xff] %vm163, %v518
        %526 = vst.msk [vmem:[%s521 + $0x20] sm:$0xff] %vm163, %v519
        %527 = vst.msk [vmem:[%s521 + $0x28] sm:$0xff] %vm163, %v520
        %v528 = vld [vmem:[%s134 + $0x20] sm:$0xff]
        %v529 = vld [vmem:[%s134 + $0x28] sm:$0xff]
        %v530 = vld [vmem:[%s134 + $0x50] sm:$0xff]
        %v531 = vld [vmem:[%s134 + $0x58] sm:$0xff]
        %v532 = vld [vmem:[%s134 + $0x80] sm:$0xff]
        %v533 = vld [vmem:[%s134 + $0x88] sm:$0xff]
        %v534 = vld [vmem:[%s134 + $0xb0] sm:$0xff]
        %v535 = vld [vmem:[%s134 + $0xb8] sm:$0xff]
        %538 = vrot.lane.b32.xlu0 %v534, 112
        %v539 = vpop.permute.xlu0 %538
        %540 = vrot.lane.b32.xlu0 %v535, 112
        %v541 = vpop.permute.xlu0 %540
        %v544 = vsel %vm163, %v539, 0.0
        %v545 = vsel %vm163, %v541, 0.0
        %v546 = vadd.f32 %v544, %v545
        %547 = vadd.xlane.f32.xlu0 %v546
        %v548 = vpop.xlane.xlu0 %547
        %v549 = vrot.slane %v548, 4
        %v550 = vadd.f32 %v548, %v549
        %v551 = vrot.slane %v550, 2
        %v552 = vadd.f32 %v550, %v551
        %v553 = vrot.slane %v552, 1
        %v554 = vadd.f32 %v552, %v553
        %s555 = vtos %v554
        %v556 = vstv %s555
        %v557 = vmul.f32 %v556, 0.00390625
        %v558 = vmul.f32 %v528, %v557
        %v559 = vmul.f32 %v529, %v557
        %v560 = vmul.f32 %v530, %v557
        %v561 = vmul.f32 %v531, %v557
        %v562 = vmul.f32 %v532, %v557
        %v563 = vmul.f32 %v533, %v557
        %570 = vrot.lane.b32.xlu0 %v558, 112
        %v571 = vpop.permute.xlu0 %570
        %572 = vrot.lane.b32.xlu0 %v559, 112
        %v573 = vpop.permute.xlu0 %572
        %574 = vrot.lane.b32.xlu0 %v560, 112
        %v575 = vpop.permute.xlu0 %574
        %576 = vrot.lane.b32.xlu0 %v561, 112
        %v577 = vpop.permute.xlu0 %576
        %578 = vrot.lane.b32.xlu0 %v562, 112
        %v579 = vpop.permute.xlu0 %578
        %580 = vrot.lane.b32.xlu0 %v563, 112
        %v581 = vpop.permute.xlu0 %580
        %s588 = scalar_lea.vmem %s152, 336 [#allocation5]
        %589 = vst.msk [vmem:[%s588] sm:$0xff] %vm163, %v571
        %590 = vst.msk [vmem:[%s588 + $0x8] sm:$0xff] %vm163, %v573
        %591 = vst.msk [vmem:[%s588 + $0x10] sm:$0xff] %vm163, %v575
        %592 = vst.msk [vmem:[%s588 + $0x18] sm:$0xff] %vm163, %v577
        %593 = vst.msk [vmem:[%s588 + $0x20] sm:$0xff] %vm163, %v579
        %594 = vst.msk [vmem:[%s588 + $0x28] sm:$0xff] %vm163, %v581
        %v595 = vld [vmem:[%s134 + $0x20] sm:$0xff]
        %v596 = vld [vmem:[%s134 + $0x28] sm:$0xff]
        %v597 = vld [vmem:[%s134 + $0x50] sm:$0xff]
        %v598 = vld [vmem:[%s134 + $0x58] sm:$0xff]
        %v599 = vld [vmem:[%s134 + $0x80] sm:$0xff]
        %v600 = vld [vmem:[%s134 + $0x88] sm:$0xff]
        %v601 = vld [vmem:[%s134 + $0xb0] sm:$0xff]
        %v602 = vld [vmem:[%s134 + $0xb8] sm:$0xff]
        %605 = vrot.lane.b32.xlu0 %v601, 96
        %v606 = vpop.permute.xlu0 %605
        %607 = vrot.lane.b32.xlu0 %v602, 96
        %v608 = vpop.permute.xlu0 %607
        %v611 = vsel %vm163, %v606, 0.0
        %v612 = vsel %vm163, %v608, 0.0
        %v613 = vadd.f32 %v611, %v612
        %614 = vadd.xlane.f32.xlu0 %v613
        %v615 = vpop.xlane.xlu0 %614
        %v616 = vrot.slane %v615, 4
        %v617 = vadd.f32 %v615, %v616
        %v618 = vrot.slane %v617, 2
        %v619 = vadd.f32 %v617, %v618
        %v620 = vrot.slane %v619, 1
        %v621 = vadd.f32 %v619, %v620
        %s622 = vtos %v621
        %v623 = vstv %s622
        %v624 = vmul.f32 %v623, 0.00390625
        %v625 = vmul.f32 %v595, %v624
        %v626 = vmul.f32 %v596, %v624
        %v627 = vmul.f32 %v597, %v624
        %v628 = vmul.f32 %v598, %v624
        %v629 = vmul.f32 %v599, %v624
        %v630 = vmul.f32 %v600, %v624
        %637 = vrot.lane.b32.xlu0 %v625, 96
        %v638 = vpop.permute.xlu0 %637
        %639 = vrot.lane.b32.xlu0 %v626, 96
        %v640 = vpop.permute.xlu0 %639
        %641 = vrot.lane.b32.xlu0 %v627, 96
        %v642 = vpop.permute.xlu0 %641
        %643 = vrot.lane.b32.xlu0 %v628, 96
        %v644 = vpop.permute.xlu0 %643
        %645 = vrot.lane.b32.xlu0 %v629, 96
        %v646 = vpop.permute.xlu0 %645
        %647 = vrot.lane.b32.xlu0 %v630, 96
        %v648 = vpop.permute.xlu0 %647
        %s655 = scalar_lea.vmem %s152, 384 [#allocation5]
        %656 = vst.msk [vmem:[%s655] sm:$0xff] %vm163, %v638
        %657 = vst.msk [vmem:[%s655 + $0x8] sm:$0xff] %vm163, %v640
        %658 = vst.msk [vmem:[%s655 + $0x10] sm:$0xff] %vm163, %v642
        %659 = vst.msk [vmem:[%s655 + $0x18] sm:$0xff] %vm163, %v644
        %660 = vst.msk [vmem:[%s655 + $0x20] sm:$0xff] %vm163, %v646
        %661 = vst.msk [vmem:[%s655 + $0x28] sm:$0xff] %vm163, %v648
        %s662 = sand.u32 %s68, 1
        %s663 = scalar_lea.sflag [#allocation4], %s662
        %s664 = sand.u32 %s68, 1
        %s665 = smul.addr %s664, 432
        %s666 = scalar_lea.vmem [#allocation5], %s665
        // Predicated region
        $region29: #{tpu_custom_call.1} parent=23 // pred_check
          %p667 = pneg %p78
        $region30: #{tpu_custom_call.1} parent=23 // pred_check_branch
          %669 = sbr.rel (%p667) target = $region32
        $region31: #{tpu_custom_call.1} parent=23 // pred_region
          %s670 = smul.u32 3, %s23
          %s672 = ssub.s32 6912, 6912
          %673 = vsyncadd %s663, %s672
          %s674 = smul.addr %s670, 18
          %s675 = smul.addr %s22, 54
          %s676 = sadd.s32 %s674, %s675
          %s677 = smul.addr %s676, 128
          %s678 = scalar_lea.hbm %s1, %s677
          %s679 = sshll.u32 %s666, 4
          %s680 = int_to_ptr.vmem [resolvable:$true] %s679
          %685 = dma.vmem_to_hbm [thread:$0]  %s680, 6912, %s678, %s663, 128, 128, 8
        $region32: #{tpu_custom_call.1} parent=23 // pred_fallthru
          _
      $region24: #{tpu_custom_call.1} parent=5 // pred_fallthru
        _
      %p686 = scmp.le.s32.totalorder 2, %s13
      // Predicated region
      $region33: #{tpu_custom_call.1} parent=5 // pred_check
        %p687 = pneg %p686
      $region34: #{tpu_custom_call.1} parent=5 // pred_check_branch
        %689 = sbr.rel (%p687) target = $region36
      $region35: #{tpu_custom_call.1} parent=5 // pred_region
        %s690 = ssub.s32 %s13, 2
        // Predicated region
        $region37: #{tpu_custom_call.1} parent=35 // pred_check
          %p691 = pneg %p84
        $region38: #{tpu_custom_call.1} parent=35 // pred_check_branch
          %693 = sbr.rel (%p691) target = $region40
        $region39: #{tpu_custom_call.1} parent=35 // pred_region
          %s694 = sand.u32 %s69, 1
          %s695 = scalar_lea.sflag [#allocation4], %s694
          %s696 = sand.u32 %s69, 1
          %s697 = smul.addr %s696, 432
          %s698 = scalar_lea.vmem [#allocation5], %s697
          %699 = dma.done %s695, 6912
        $region40: #{tpu_custom_call.1} parent=35 // pred_fallthru
          _
      $region36: #{tpu_custom_call.1} parent=5 // pred_fallthru
        _
    $region6: #{tpu_custom_call.1} parent=1 // loop_footer
      %s17 = sadd.s32 1, %s13
    $region7: #{tpu_custom_call.1} parent=1 // loop_footer_branch
      %12 = sbr.rel target = $region3
    $region8: #{tpu_custom_call.1} parent=1 // loop_exit
      _
    %700 = vsyncpa [#allocation3], 1
    %s701 = scalar_lea.sflag [#allocation3], 1
    %702 = vsyncpa %s701, 1
    %703 = vsyncpa [#allocation4], 1
    %s704 = scalar_lea.sflag [#allocation4], 1
    %705 = vsyncpa %s704, 1

</llo_original>
